<compile_context>
chip_gen: v7x
topology: tpu7x:2x2x1
jax: 0.10.0
libtpu: 0.0.40
codegen_flags: <defaults>
</compile_context>

<pallas_src>
import functools

import numpy as np
import jax
import jax.numpy as jnp
from jax import lax
from jax.experimental import pallas as pl
from jax.experimental.pallas import tpu as pltpu

FPAD = 128  # padded feature / hidden width (lane-dense)


def sage_kernel(idx_ref,        # SMEM (depth*n_pad*K,) int32, scalar-prefetch
                x_ref,          # VMEM (n_pad, FPAD) f32   (used only at d==0)
                w_self_ref,     # VMEM (1, FPAD, FPAD) bf16
                w_nbr_ref,      # VMEM (1, FPAD, FPAD) bf16
                b_ref,          # VMEM (1, 1, FPAD) f32 (padded entries = -30)
                out_ref,        # VMEM (tile_n, FPAD) f32
                h_ref,          # scratch (2*n_pad, FPAD) f32  ping-pong h
                nbr_ref,        # scratch (tile_n, FPAD) f32   gathered max
                *, n_pad, tile_n, K):
    d = pl.program_id(0)        # depth (outer, sequential)
    t = pl.program_id(1)        # node tile (inner)

    # Initialize the "current" h buffer with the (padded) input features once.
    @pl.when((d == 0) & (t == 0))
    def _init():
        h_ref[pl.ds(0, n_pad), :] = x_ref[...]

    cur = d % 2
    cur_base = cur * n_pad            # rows of h_old
    nxt_base = (1 - cur) * n_pad      # rows of h_new
    t_off = t * tile_n
    idx_base = d * (n_pad * K) + t_off * K

    # Direct row gather from the VMEM-resident h_old, max-aggregated over K.
    def gather_row(i, carry):
        base = idx_base + i * K
        acc = h_ref[pl.ds(cur_base + idx_ref[base], 1), :]
        for k in range(1, K):                       # K is small & static
            acc = jnp.maximum(
                acc, h_ref[pl.ds(cur_base + idx_ref[base + k], 1), :])
        nbr_ref[pl.ds(i, 1), :] = acc
        return carry

    lax.fori_loop(0, tile_n, gather_row, 0)

    self_start = pl.multiple_of(cur_base + t_off, 8)
    h_self = h_ref[pl.ds(self_start, tile_n), :]    # (tile_n, FPAD) f32
    h_nbr = nbr_ref[...]                            # (tile_n, FPAD) f32

    # Two 128-deep bf16 dots (self | neighbor halves), f32 accumulate.
    z = (jnp.dot(h_self.astype(jnp.bfloat16), w_self_ref[0],
                 preferred_element_type=jnp.float32)
         + jnp.dot(h_nbr.astype(jnp.bfloat16), w_nbr_ref[0],
                   preferred_element_type=jnp.float32)
         + b_ref[0])

    s = jax.nn.sigmoid(z)                           # padded cols -> ~1e-13
    inv_norm = lax.rsqrt(jnp.sum(s * s, axis=-1, keepdims=True) + 1e-12)
    h_new = s * inv_norm                            # (tile_n, FPAD)

    dst_start = pl.multiple_of(nxt_base + t_off, 8)
    h_ref[pl.ds(dst_start, tile_n), :] = h_new      # becomes h_old next depth
    out_ref[...] = h_new                            # last depth's write wins


def sage_forward(x, nbr_idx_per_depth, params, *, max_tile_n=512):
    """x: (N, F) f32; nbr_idx_per_depth: list of (N, K) int32;
    params: list of (W, b), torch-style W: (H_out, 2*F_in)."""
    x = jnp.asarray(x, jnp.float32)
    N, f_in = x.shape
    depth = len(params)
    K = int(np.asarray(nbr_idx_per_depth[0]).shape[1])

    # Node-axis padding / tiling (tile_n rows per grid step, multiple of 8).
    if N <= max_tile_n:
        n_pad = max(8, ((N + 7) // 8) * 8)
        tile_n = n_pad
    else:
        tile_n = max_tile_n
        n_pad = ((N + tile_n - 1) // tile_n) * tile_n
    n_tiles = n_pad // tile_n
    assert tile_n % 8 == 0 and n_pad % tile_n == 0

    x_pad = jnp.zeros((n_pad, FPAD), jnp.float32).at[:N, :f_in].set(x)

    w_self_l, w_nbr_l, b_l = [], [], []
    f_cur = f_in
    for (w, b) in params:
        w = jnp.asarray(w, jnp.float32)
        b = jnp.asarray(b, jnp.float32)
        h_out = int(w.shape[0])
        assert f_cur <= FPAD and h_out <= FPAD
        wt = w.T                                          # (2*f_cur, h_out)
        ws = jnp.zeros((FPAD, FPAD), jnp.float32).at[:f_cur, :h_out].set(
            wt[:f_cur])                                   # self half
        wn = jnp.zeros((FPAD, FPAD), jnp.float32).at[:f_cur, :h_out].set(
            wt[f_cur:2 * f_cur])                          # neighbor half
        # Padding mask folded into params: padded bias = -30 -> sigmoid ~ 1e-13.
        bp = jnp.full((1, FPAD), -30.0, jnp.float32).at[0, :h_out].set(b)
        w_self_l.append(ws.astype(jnp.bfloat16))
        w_nbr_l.append(wn.astype(jnp.bfloat16))
        b_l.append(bp)
        f_cur = h_out

    w_self_all = jnp.stack(w_self_l)      # (depth, FPAD, FPAD) bf16
    w_nbr_all = jnp.stack(w_nbr_l)        # (depth, FPAD, FPAD) bf16
    b_all = jnp.stack(b_l)                # (depth, 1, FPAD) f32

    # Flattened int32 neighbor table -> SMEM via scalar prefetch (1-D layout
    # avoids the [R, C] -> [R, 128] SMEM padding blow-up). Padded rows index 0.
    idx_np = np.zeros((depth, n_pad, K), np.int32)
    for d, nbr in enumerate(nbr_idx_per_depth):
        idx_np[d, :N, :] = np.asarray(nbr, np.int32)
    idx_flat = jnp.asarray(idx_np.reshape(-1))

    kernel = functools.partial(sage_kernel, n_pad=n_pad, tile_n=tile_n, K=K)

    # Explicit VMEM budget: h ping-pong + x + nbr scratch + out (2x) + bf16 W
    # (2x, double-buffered) + bias, plus headroom.
    vmem_bytes = (2 * n_pad * FPAD * 4 + 2 * n_pad * FPAD * 4
                  + tile_n * FPAD * 4 + 2 * tile_n * FPAD * 4
                  + 2 * 2 * FPAD * FPAD * 2 + 2 * FPAD * 4)
    vmem_limit = int(min(100 * 1024 * 1024, vmem_bytes + 16 * 1024 * 1024))

    out_pad = pl.pallas_call(
        kernel,
        out_shape=jax.ShapeDtypeStruct((n_pad, FPAD), jnp.float32),
        grid_spec=pltpu.PrefetchScalarGridSpec(
            num_scalar_prefetch=1,
            grid=(depth, n_tiles),          # depth outer, node tiles inner
            in_specs=[
                pl.BlockSpec((n_pad, FPAD), lambda d, t, idx: (0, 0)),
                pl.BlockSpec((1, FPAD, FPAD), lambda d, t, idx: (d, 0, 0)),
                pl.BlockSpec((1, FPAD, FPAD), lambda d, t, idx: (d, 0, 0)),
                pl.BlockSpec((1, 1, FPAD), lambda d, t, idx: (d, 0, 0)),
            ],
            out_specs=pl.BlockSpec((tile_n, FPAD), lambda d, t, idx: (t, 0)),
            scratch_shapes=[
                pltpu.VMEM((2 * n_pad, FPAD), jnp.float32),   # ping-pong h
                pltpu.VMEM((tile_n, FPAD), jnp.float32),      # gathered nbrs
            ],
        ),
        compiler_params=pltpu.CompilerParams(
            dimension_semantics=("arbitrary", "arbitrary"),
            vmem_limit_bytes=vmem_limit),
    )(idx_flat, x_pad, w_self_all, w_nbr_all, b_all)

    h_final = int(np.asarray(params[-1][0]).shape[0])
    return out_pad[:N, :h_final]


def sage_forward_ref(x, nbr_idx_per_depth, params):
    """Pure-JAX f32 reference mirroring the PyTorch forward."""
    h_old = jnp.asarray(x, jnp.float32)
    for nbr_idx, (w, b) in zip(nbr_idx_per_depth, params):
        gathered = h_old[jnp.asarray(nbr_idx)]            # (N, K, F)
        h_nbr = gathered.max(axis=1)
        h_cat = jnp.concatenate([h_old, h_nbr], axis=-1)
        z = h_cat @ jnp.asarray(w, jnp.float32).T + jnp.asarray(b, jnp.float32)
        s = jax.nn.sigmoid(z)
        h_old = s / jnp.linalg.norm(s, axis=-1, keepdims=True)
    return h_old


def sample_neighbors(adj, num_neighbors, rng):
    """Mimics SAGELayer.sample: without replacement if enough neighbors,
    otherwise with replacement (deterministic via seeded numpy rng)."""
    N = len(adj)
    idx = np.zeros((N, num_neighbors), dtype=np.int32)
    for v in range(N):
        nbrs = np.asarray(adj[v])
        if len(nbrs) >= num_neighbors:
            idx[v] = rng.choice(nbrs, size=num_neighbors, replace=False)
        else:
            idx[v] = rng.choice(nbrs, size=num_neighbors, replace=True)
    return idx


if __name__ == "__main__":
    # Small, module-consistent shapes (original hardcodes 2708 Cora nodes;
    # we parametrize the node count small).
    N = 64
    in_features = 16
    hidden = 20            # linear_1: Linear(2*in_features, 20)
    out_features = 10      # linear_2: Linear(20*2, out_features)
    depth = 2
    num_neighbors = 4

    # Deterministic small graph: ring where each node links to v±1, v±2.
    adj = [[(v - 2) % N, (v - 1) % N, (v + 1) % N, (v + 2) % N]
           for v in range(N)]
    rng = np.random.default_rng(0)
    nbr_idx_per_depth = [sample_neighbors(adj, num_neighbors, rng)
                         for _ in range(depth)]

    # Deterministic parameter init (torch.nn.Linear-style uniform bounds).
    key = jax.random.PRNGKey(0)
    k1, k2, k3, k4, kx = jax.random.split(key, 5)

    def lin_init(kw, kb, out_f, in_f):
        bound = 1.0 / np.sqrt(in_f)
        w = jax.random.uniform(kw, (out_f, in_f), jnp.float32, -bound, bound)
        b = jax.random.uniform(kb, (out_f,), jnp.float32, -bound, bound)
        return w, b

    w1, b1 = lin_init(k1, k2, hidden, 2 * in_features)     # (20, 32), (20,)
    w2, b2 = lin_init(k3, k4, out_features, 2 * hidden)    # (10, 40), (10,)
    params = [(w1, b1), (w2, b2)]

    x = jax.random.normal(kx, (N, in_features), jnp.float32)

    out = jax.block_until_ready(sage_forward(x, nbr_idx_per_depth, params))
    ref = jax.block_until_ready(sage_forward_ref(x, nbr_idx_per_depth, params))

    assert out.shape == (N, out_features), out.shape
    # Tolerance loosened (5e-3 -> 2e-2) to account for bf16 MXU operands vs the
    # f32 reference, per the review's correctness note.
    np.testing.assert_allclose(np.asarray(out), np.asarray(ref),
                               rtol=2e-2, atol=2e-2)
    print("KERNEL_OK")
</pallas_src>

<mosaic_0001>
module attributes {stable_mosaic.version = 11 : i64} {
  func.func @sage_kernel(%arg0: i32, %arg1: i32, %arg2: memref<512xi32, #tpu.memory_space<smem>>, %arg3: memref<64x128xf32, #tpu.memory_space<vmem>>, %arg4: memref<1x128x128xbf16, #tpu.memory_space<vmem>>, %arg5: memref<1x128x128xbf16, #tpu.memory_space<vmem>>, %arg6: memref<1x1x128xf32, #tpu.memory_space<vmem>>, %arg7: memref<64x128xf32, #tpu.memory_space<vmem>>, %arg8: memref<128x128xf32, #tpu.memory_space<vmem>>, %arg9: memref<64x128xf32, #tpu.memory_space<vmem>>) attributes {dimension_semantics = [#tpu.dimension_semantics<arbitrary>, #tpu.dimension_semantics<arbitrary>], iteration_bounds = array<i64: 2, 1>, scalar_prefetch = 1 : i64, scratch_operands = 2 : i64, tpu.core_type = #tpu.core_type<tc>, window_params = [{pipeline_mode = #tpu.pipeline_mode<synchronous>, transform_indices = @transform_0, window_bounds = array<i64: 64, 128>}, {transform_indices = @transform_1, window_bounds = array<i64: 1, 128, 128>}, {transform_indices = @transform_2, window_bounds = array<i64: 1, 128, 128>}, {transform_indices = @transform_3, window_bounds = array<i64: 1, 1, 128>}, {transform_indices = @transform_4, window_bounds = array<i64: 64, 128>}]} {
    %c0_i32 = arith.constant 0 : i32
    %0 = arith.cmpi eq, %arg0, %c0_i32 : i32
    %c0_i32_0 = arith.constant 0 : i32
    %1 = arith.cmpi eq, %arg1, %c0_i32_0 : i32
    %2 = arith.andi %0, %1 : i1
    %3 = arith.extui %2 : i1 to i32
    %c0_i32_1 = arith.constant 0 : i32
    %4 = arith.cmpi ne, %3, %c0_i32_1 : i32
    scf.if %4 {
      %c0_31 = arith.constant 0 : index
      %c0_32 = arith.constant 0 : index
      %59 = vector.load %arg3[%c0_31, %c0_32] : memref<64x128xf32, #tpu.memory_space<vmem>>, vector<64x128xf32>
      %c0_33 = arith.constant 0 : index
      %c0_34 = arith.constant 0 : index
      %60 = vector.load %arg8[%c0_33, %c0_34] : memref<128x128xf32, #tpu.memory_space<vmem>>, vector<64x128xf32>
      tpu.vector_store %arg8[%c0_33, %c0_34], %59 {strides = array<i32>} : memref<128x128xf32, #tpu.memory_space<vmem>>, vector<64x128xf32>,
    } else {
    }
    %c2_i32 = arith.constant 2 : i32
    %c0_i32_2 = arith.constant 0 : i32
    %5 = arith.cmpi eq, %c2_i32, %c0_i32_2 : i32
    %c1_i32 = arith.constant 1 : i32
    %6 = arith.select %5, %c1_i32, %c2_i32 : i32
    %7 = arith.remsi %arg0, %6 : i32
    %c0_i32_3 = arith.constant 0 : i32
    %8 = arith.cmpi ne, %7, %c0_i32_3 : i32
    %c0_i32_4 = arith.constant 0 : i32
    %9 = arith.cmpi slt, %7, %c0_i32_4 : i32
    %c0_i32_5 = arith.constant 0 : i32
    %10 = arith.cmpi slt, %6, %c0_i32_5 : i32
    %11 = arith.xori %9, %10 : i1
    %12 = arith.andi %11, %8 : i1
    %13 = arith.addi %7, %6 : i32
    %14 = arith.select %12, %13, %7 : i32
    %c64_i32 = arith.constant 64 : i32
    %15 = arith.muli %14, %c64_i32 : i32
    %c1_i32_6 = arith.constant 1 : i32
    %16 = arith.subi %c1_i32_6, %14 : i32
    %c64_i32_7 = arith.constant 64 : i32
    %17 = arith.muli %16, %c64_i32_7 : i32
    %c64_i32_8 = arith.constant 64 : i32
    %18 = arith.muli %arg1, %c64_i32_8 : i32
    %c256_i32 = arith.constant 256 : i32
    %19 = arith.muli %arg0, %c256_i32 : i32
    %c4_i32 = arith.constant 4 : i32
    %20 = arith.muli %18, %c4_i32 : i32
    %21 = arith.addi %19, %20 : i32
    %c0_i32_9 = arith.constant 0 : i32
    %c64_i32_10 = arith.constant 64 : i32
    %22 = arith.addi %c0_i32_9, %c64_i32_10 : i32
    %c1_i32_11 = arith.constant 1 : i32
    scf.for %arg10 = %c0_i32_9 to %22 step %c1_i32_11  : i32 {
      %c4_i32_31 = arith.constant 4 : i32
      %59 = arith.muli %arg10, %c4_i32_31 : i32
      %60 = arith.addi %21, %59 : i32
      %61 = arith.index_cast %60 : i32 to index
      %62 = memref.load %arg2[%61] : memref<512xi32, #tpu.memory_space<smem>>
      %63 = arith.addi %15, %62 : i32
      %64 = arith.index_cast %63 : i32 to index
      %c0_32 = arith.constant 0 : index
      %65 = vector.load %arg8[%64, %c0_32] : memref<128x128xf32, #tpu.memory_space<vmem>>, vector<1x128xf32>
      %c1_i32_33 = arith.constant 1 : i32
      %66 = arith.addi %60, %c1_i32_33 : i32
      %67 = arith.index_cast %66 : i32 to index
      %68 = memref.load %arg2[%67] : memref<512xi32, #tpu.memory_space<smem>>
      %69 = arith.addi %15, %68 : i32
      %70 = arith.index_cast %69 : i32 to index
      %c0_34 = arith.constant 0 : index
      %71 = vector.load %arg8[%70, %c0_34] : memref<128x128xf32, #tpu.memory_space<vmem>>, vector<1x128xf32>
      %72 = arith.maximumf %65, %71 : vector<1x128xf32>
      %c2_i32_35 = arith.constant 2 : i32
      %73 = arith.addi %60, %c2_i32_35 : i32
      %74 = arith.index_cast %73 : i32 to index
      %75 = memref.load %arg2[%74] : memref<512xi32, #tpu.memory_space<smem>>
      %76 = arith.addi %15, %75 : i32
      %77 = arith.index_cast %76 : i32 to index
      %c0_36 = arith.constant 0 : index
      %78 = vector.load %arg8[%77, %c0_36] : memref<128x128xf32, #tpu.memory_space<vmem>>, vector<1x128xf32>
      %79 = arith.maximumf %72, %78 : vector<1x128xf32>
      %c3_i32 = arith.constant 3 : i32
      %80 = arith.addi %60, %c3_i32 : i32
      %81 = arith.index_cast %80 : i32 to index
      %82 = memref.load %arg2[%81] : memref<512xi32, #tpu.memory_space<smem>>
      %83 = arith.addi %15, %82 : i32
      %84 = arith.index_cast %83 : i32 to index
      %c0_37 = arith.constant 0 : index
      %85 = vector.load %arg8[%84, %c0_37] : memref<128x128xf32, #tpu.memory_space<vmem>>, vector<1x128xf32>
      %86 = arith.maximumf %79, %85 : vector<1x128xf32>
      %87 = arith.index_cast %arg10 : i32 to index
      %c0_38 = arith.constant 0 : index
      %88 = vector.load %arg9[%87, %c0_38] : memref<64x128xf32, #tpu.memory_space<vmem>>, vector<1x128xf32>
      tpu.vector_store %arg9[%87, %c0_38], %86 {strides = array<i32>} : memref<64x128xf32, #tpu.memory_space<vmem>>, vector<1x128xf32>,
    }
    %c64_i32_12 = arith.constant 64 : i32
    %23 = arith.addi %15, %18 : i32
    %24 = tpu.assume_multiple %23, 8 : i32
    %25 = arith.index_cast %24 : i32 to index
    %c0 = arith.constant 0 : index
    %26 = vector.load %arg8[%25, %c0] : memref<128x128xf32, #tpu.memory_space<vmem>>, vector<64x128xf32>
    %c0_13 = arith.constant 0 : index
    %c0_14 = arith.constant 0 : index
    %27 = vector.load %arg9[%c0_13, %c0_14] : memref<64x128xf32, #tpu.memory_space<vmem>>, vector<64x128xf32>
    %28 = arith.truncf %26 : vector<64x128xf32> to vector<64x128xbf16>
    %c0_15 = arith.constant 0 : index
    %c0_16 = arith.constant 0 : index
    %c0_17 = arith.constant 0 : index
    %29 = vector.load %arg4[%c0_15, %c0_16, %c0_17] : memref<1x128x128xbf16, #tpu.memory_space<vmem>>, vector<1x128x128xbf16>
    %30 = vector.shape_cast %29 : vector<1x128x128xbf16> to vector<128x128xbf16>
    %cst = arith.constant dense<0.000000e+00> : vector<64x128xf32>
    %31 = tpu.matmul %28, %30, %cst {dimension_numbers = #tpu.dot_dimension_numbers<[1], [0], [0], [1], [0, 0, 1, 1], [], []>} : vector<64x128xbf16>, vector<128x128xbf16>, vector<64x128xf32> -> vector<64x128xf32>
    %32 = arith.truncf %27 : vector<64x128xf32> to vector<64x128xbf16>
    %c0_18 = arith.constant 0 : index
    %c0_19 = arith.constant 0 : index
    %c0_20 = arith.constant 0 : index
    %33 = vector.load %arg5[%c0_18, %c0_19, %c0_20] : memref<1x128x128xbf16, #tpu.memory_space<vmem>>, vector<1x128x128xbf16>
    %34 = vector.shape_cast %33 : vector<1x128x128xbf16> to vector<128x128xbf16>
    %cst_21 = arith.constant dense<0.000000e+00> : vector<64x128xf32>
    %35 = tpu.matmul %32, %34, %cst_21 {dimension_numbers = #tpu.dot_dimension_numbers<[1], [0], [0], [1], [0, 0, 1, 1], [], []>} : vector<64x128xbf16>, vector<128x128xbf16>, vector<64x128xf32> -> vector<64x128xf32>
    %36 = arith.addf %31, %35 : vector<64x128xf32>
    %c0_22 = arith.constant 0 : index
    %c0_23 = arith.constant 0 : index
    %c0_24 = arith.constant 0 : index
    %37 = vector.load %arg6[%c0_22, %c0_23, %c0_24] : memref<1x1x128xf32, #tpu.memory_space<vmem>>, vector<1x1x128xf32>
    %38 = vector.shape_cast %37 : vector<1x1x128xf32> to vector<1x128xf32>
    %39 = vector.broadcast %38 : vector<1x128xf32> to vector<64x128xf32>
    %40 = arith.addf %36, %39 : vector<64x128xf32>
    %41 = arith.negf %40 : vector<64x128xf32>
    %42 = math.exp %41 : vector<64x128xf32>
    %cst_25 = arith.constant 1.000000e+00 : f32
    %43 = vector.broadcast %cst_25 : f32 to vector<64x128xf32>
    %44 = arith.addf %43, %42 : vector<64x128xf32>
    %45 = arith.divf %43, %44 : vector<64x128xf32>
    %46 = arith.mulf %45, %45 : vector<64x128xf32>
    %cst_26 = arith.constant dense<0.000000e+00> : vector<64xf32>
    %47 = vector.multi_reduction <add>, %46, %cst_26 [1] : vector<64x128xf32> to vector<64xf32>
    %48 = vector.shape_cast %47 : vector<64xf32> to vector<64x1xf32>
    %cst_27 = arith.constant 9.99999996E-13 : f32
    %49 = vector.broadcast %cst_27 : f32 to vector<64x1xf32>
    %50 = arith.addf %48, %49 : vector<64x1xf32>
    %51 = math.rsqrt %50 : vector<64x1xf32>
    %52 = vector.broadcast %51 : vector<64x1xf32> to vector<64x128xf32>
    %53 = arith.mulf %45, %52 : vector<64x128xf32>
    %54 = arith.addi %17, %18 : i32
    %55 = tpu.assume_multiple %54, 8 : i32
    %56 = arith.index_cast %55 : i32 to index
    %c0_28 = arith.constant 0 : index
    %57 = vector.load %arg8[%56, %c0_28] : memref<128x128xf32, #tpu.memory_space<vmem>>, vector<64x128xf32>
    tpu.vector_store %arg8[%56, %c0_28], %53 {strides = array<i32>} : memref<128x128xf32, #tpu.memory_space<vmem>>, vector<64x128xf32>,
    %c0_29 = arith.constant 0 : index
    %c0_30 = arith.constant 0 : index
    %58 = vector.load %arg7[%c0_29, %c0_30] : memref<64x128xf32, #tpu.memory_space<vmem>>, vector<64x128xf32>
    tpu.vector_store %arg7[%c0_29, %c0_30], %53 {strides = array<i32>} : memref<64x128xf32, #tpu.memory_space<vmem>>, vector<64x128xf32>,
    return
  }
  func.func @transform_0(%arg0: i32, %arg1: i32, %arg2: memref<512xi32, #tpu.memory_space<smem>>) -> (i32, i32) {
    %c0_i32 = arith.constant 0 : i32
    %c0_i32_0 = arith.constant 0 : i32
    %c0_i32_1 = arith.constant 0 : i32
    return %c0_i32, %c0_i32_0 : i32, i32
  }
  func.func @transform_1(%arg0: i32, %arg1: i32, %arg2: memref<512xi32, #tpu.memory_space<smem>>) -> (i32, i32, i32) {
    %c0_i32 = arith.constant 0 : i32
    %c0_i32_0 = arith.constant 0 : i32
    %c0_i32_1 = arith.constant 0 : i32
    return %arg0, %c0_i32, %c0_i32_0 : i32, i32, i32
  }
  func.func @transform_2(%arg0: i32, %arg1: i32, %arg2: memref<512xi32, #tpu.memory_space<smem>>) -> (i32, i32, i32) {
    %c0_i32 = arith.constant 0 : i32
    %c0_i32_0 = arith.constant 0 : i32
    %c0_i32_1 = arith.constant 0 : i32
    return %arg0, %c0_i32, %c0_i32_0 : i32, i32, i32
  }
  func.func @transform_3(%arg0: i32, %arg1: i32, %arg2: memref<512xi32, #tpu.memory_space<smem>>) -> (i32, i32, i32) {
    %c0_i32 = arith.constant 0 : i32
    %c0_i32_0 = arith.constant 0 : i32
    %c0_i32_1 = arith.constant 0 : i32
    return %arg0, %c0_i32, %c0_i32_0 : i32, i32, i32
  }
  func.func @transform_4(%arg0: i32, %arg1: i32, %arg2: memref<512xi32, #tpu.memory_space<smem>>) -> (i32, i32) {
    %c0_i32 = arith.constant 0 : i32
    %c0_i32_0 = arith.constant 0 : i32
    return %arg1, %c0_i32 : i32, i32
  }
}

</mosaic_0001>

<llo_original>
// kernel: tpu_custom_call.1
$region0: #{tpu_custom_call.1}
  #allocation0 [shape = 'u32[]', space=smem, size = 0x4, offset = 0x4, fixed_abs, tag = 'smem constant byte address 0x4 - core index']
  #allocation1 [shape = 'u32[144,128]{1,0:T(1,128)}', space=vmem, size = 0x12000, scoped, tag = 'internal scratch']
  #allocation2 [shape = 'f32[128,128]{1,0:T(8,128)}', space=vmem, size = 0x10000, scoped, tag = 'scratch operand']
  #allocation3 [shape = 'f32[64,128]{1,0:T(8,128)}', space=vmem, size = 0x8000, scoped, tag = 'scratch operand']
  #allocation4 [shape = 's32[1]{0}', space=sflag, size = 0x4, scoped, tag = 'scoped memory for tpu_custom_call.1']
  #allocation5 [shape = 'u8[2048]{0}', space=smem, size = 0x800, scoped, tag = 'prefetched SMEM operand 0']
  %s0 = inlined_call_operand.hbm [shape: s32[512], index: 0, kind: input, shape index: {}]
  %s1 = inlined_call_operand.hbm [shape: f32[64,128], index: 1, kind: input, shape index: {}]
  %s2 = inlined_call_operand.hbm [shape: bf16[2,128,128], index: 2, kind: input, shape index: {}]
  %s3 = inlined_call_operand.hbm [shape: bf16[2,128,128], index: 3, kind: input, shape index: {}]
  %s4 = inlined_call_operand.vmem [shape: f32[2,1,128], index: 4, kind: input, shape index: {}]
  %s5 = inlined_call_operand.hbm [shape: f32[64,128], index: 5, kind: output, shape index: {}]
  %s6 = sld [smem:[#allocation0]]
  $region72: #{tpu_custom_call.1} parent=0
    _
  %s8 = ssub.s32 1, %s6
  %s9 = scalar_select 0, %s8, %s6
  %11 = dma.hbm_to_smem %s0, 64, [#allocation5], [#allocation4]
  %12 = dma.done [#allocation4], 64
  %13 = sfence
  $region1: #{tpu_custom_call.1} parent=0
    #allocation6 [shape = 'u8[32768]{0}', space=vmem, size = 0x8000, scoped, tag = 'input window, operand 1, single buffered']
    #allocation7 [shape = 's32[2]{0}', space=sflag, size = 0x8, scoped, tag = 'scoped memory for tpu_custom_call.1']
    #allocation8 [shape = 's32[2]{0}', space=sflag, size = 0x8, scoped, tag = 'scoped memory for tpu_custom_call.1']
    #allocation9 [shape = 'u8[65536]{0}', space=vmem, size = 0x10000, scoped, tag = 'input window, operand 2']
    #allocation10 [shape = 's32[2]{0}', space=sflag, size = 0x8, scoped, tag = 'scoped memory for tpu_custom_call.1']
    #allocation11 [shape = 'u8[65536]{0}', space=vmem, size = 0x10000, scoped, tag = 'input window, operand 3']
    #allocation12 [shape = 'u8[32768]{0}', space=vmem, size = 0x8000, scoped, tag = 'output window, operand 0, single buffered']
    %14 = vsyncpa [#allocation7], 0
    %15 = vsyncpa [#allocation10], 0
    %s16 = scalar_lea.sflag [#allocation10], 1
    %17 = vsyncpa %s16, 0
    %18 = vsyncpa [#allocation8], 0
    loop: start=0, step=1, limit=4
    $region2: #{tpu_custom_call.1} parent=1 // loop_pre_header
      _
    $region3: #{tpu_custom_call.1} parent=1 // loop_header
      %s20 = sphi 0, %s24
      %p21 = scmp.ge.s32.totalorder %s20, 4
      %s27 = sphi 0, %s39
      %s28 = sphi 0, %s35
      %s29 = sphi 0, %s27
      %s30 = sphi 0, %s28
      %s31 = sphi 0, %s29
      %s32 = sphi 0, %s30
      %s40 = sphi 0, %s40
      %s42 = sphi 0, %s40
      %s43 = sphi 0, %s42
      %s57 = sphi 0, %s43
      %s63 = sphi 0, %s65
      %s66 = sphi 0, %s63
      %s67 = sphi 0, %s66
      %s83 = sphi 0, %s67
      %s89 = sphi 0, %s91
      %s92 = sphi 0, %s89
      %s93 = sphi 0, %s92
      %s109 = sphi 0, %s93
      %s115 = sphi 0, %s117
      %s118 = sphi 0, %s115
      %s119 = sphi 0, %s118
      %s135 = sphi 0, %s119
      %s141 = sphi 0, %s143
      %s144 = sphi 0, %s141
      %s145 = sphi 0, %s144
      %s161 = sphi 0, %s145
    $region4: #{tpu_custom_call.1} parent=1 // loop_header_branch
      %23 = sbr.rel (%p21) target = $region8
    $region5: #{tpu_custom_call.1} parent=1 // loop_body
      %s25 = ssub.s32 %s20, 1
      %s26 = ssub.s32 %s20, 2
      %s33 = sadd.s32 1, %s28
      %p34 = scmp.ge.s32.totalorder %s33, 1
      %s35 = scalar_select %p34, 0, %s33
      %s36 = sadd.s32 1, %s27
      %s37 = scalar_select %p34, %s36, %s27
      %p38 = scmp.ge.s32.totalorder %s37, 2
      %s39 = scalar_select %p38, 0, %s37
      %s41 = sadd.s32 %s40, 1
      %p44 = scmp.eq.s32.totalorder %s20, 1
      %p45 = scmp.ne.s32.totalorder %s40, %s42
      %p46 = scmp.eq.s32.totalorder %s20, 0
      %p47 = por %p45, %p46
      %p48 = scmp.ne.s32.totalorder %s40, %s42
      %p49 = scmp.eq.s32.totalorder %s25, 1
      %p50 = por %p48, %p49
      %p51 = scmp.ne.s32.totalorder %s42, %s43
      %p52 = scmp.eq.s32.totalorder %s25, 0
      %p53 = por %p51, %p52
      %p54 = scmp.ne.s32.totalorder %s42, %s43
      %p55 = scmp.eq.s32.totalorder %s26, 1
      %p56 = por %p54, %p55
      %p58 = scmp.ne.s32.totalorder %s43, %s57
      %p59 = scmp.eq.s32.totalorder %s26, 0
      %p60 = por %p58, %p59
      %s61 = ssub.s32 %s27, %s39
      %p62 = scmp.eq.s32.totalorder %s61, 0
      %s64 = sadd.s32 %s63, 1
      %s65 = scalar_select %p62, %s63, %s64
      %p68 = pneg %p62
      %p69 = scmp.eq.s32.totalorder %s20, 1
      %p70 = por %p68, %p69
      %p71 = scmp.ne.s32.totalorder %s63, %s66
      %p72 = scmp.eq.s32.totalorder %s20, 0
      %p73 = por %p71, %p72
      %p74 = scmp.ne.s32.totalorder %s63, %s66
      %p75 = scmp.eq.s32.totalorder %s25, 1
      %p76 = por %p74, %p75
      %p77 = scmp.ne.s32.totalorder %s66, %s67
      %p78 = scmp.eq.s32.totalorder %s25, 0
      %p79 = por %p77, %p78
      %p80 = scmp.ne.s32.totalorder %s66, %s67
      %p81 = scmp.eq.s32.totalorder %s26, 1
      %p82 = por %p80, %p81
      %p84 = scmp.ne.s32.totalorder %s67, %s83
      %p85 = scmp.eq.s32.totalorder %s26, 0
      %p86 = por %p84, %p85
      %s87 = ssub.s32 %s27, %s39
      %p88 = scmp.eq.s32.totalorder %s87, 0
      %s90 = sadd.s32 %s89, 1
      %s91 = scalar_select %p88, %s89, %s90
      %p94 = pneg %p88
      %p95 = scmp.eq.s32.totalorder %s20, 1
      %p96 = por %p94, %p95
      %p97 = scmp.ne.s32.totalorder %s89, %s92
      %p98 = scmp.eq.s32.totalorder %s20, 0
      %p99 = por %p97, %p98
      %p100 = scmp.ne.s32.totalorder %s89, %s92
      %p101 = scmp.eq.s32.totalorder %s25, 1
      %p102 = por %p100, %p101
      %p103 = scmp.ne.s32.totalorder %s92, %s93
      %p104 = scmp.eq.s32.totalorder %s25, 0
      %p105 = por %p103, %p104
      %p106 = scmp.ne.s32.totalorder %s92, %s93
      %p107 = scmp.eq.s32.totalorder %s26, 1
      %p108 = por %p106, %p107
      %p110 = scmp.ne.s32.totalorder %s93, %s109
      %p111 = scmp.eq.s32.totalorder %s26, 0
      %p112 = por %p110, %p111
      %s113 = ssub.s32 %s27, %s39
      %p114 = scmp.eq.s32.totalorder %s113, 0
      %s116 = sadd.s32 %s115, 1
      %s117 = scalar_select %p114, %s115, %s116
      %p120 = pneg %p114
      %p121 = scmp.eq.s32.totalorder %s20, 1
      %p122 = por %p120, %p121
      %p123 = scmp.ne.s32.totalorder %s115, %s118
      %p124 = scmp.eq.s32.totalorder %s20, 0
      %p125 = por %p123, %p124
      %p126 = scmp.ne.s32.totalorder %s115, %s118
      %p127 = scmp.eq.s32.totalorder %s25, 1
      %p128 = por %p126, %p127
      %p129 = scmp.ne.s32.totalorder %s118, %s119
      %p130 = scmp.eq.s32.totalorder %s25, 0
      %p131 = por %p129, %p130
      %p132 = scmp.ne.s32.totalorder %s118, %s119
      %p133 = scmp.eq.s32.totalorder %s26, 1
      %p134 = por %p132, %p133
      %p136 = scmp.ne.s32.totalorder %s119, %s135
      %p137 = scmp.eq.s32.totalorder %s26, 0
      %p138 = por %p136, %p137
      %s139 = ssub.s32 %s28, %s35
      %p140 = scmp.eq.s32.totalorder %s139, 0
      %s142 = sadd.s32 %s141, 1
      %s143 = scalar_select %p140, %s141, %s142
      %p146 = pneg %p140
      %p147 = scmp.eq.s32.totalorder %s20, 1
      %p148 = por %p146, %p147
      %p149 = scmp.ne.s32.totalorder %s141, %s144
      %p150 = scmp.eq.s32.totalorder %s20, 0
      %p151 = por %p149, %p150
      %p152 = scmp.ne.s32.totalorder %s141, %s144
      %p153 = scmp.eq.s32.totalorder %s25, 1
      %p154 = por %p152, %p153
      %p155 = scmp.ne.s32.totalorder %s144, %s145
      %p156 = scmp.eq.s32.totalorder %s25, 0
      %p157 = por %p155, %p156
      %p158 = scmp.ne.s32.totalorder %s144, %s145
      %p159 = scmp.eq.s32.totalorder %s26, 1
      %p160 = por %p158, %p159
      %p162 = scmp.ne.s32.totalorder %s145, %s161
      %p163 = scmp.eq.s32.totalorder %s26, 0
      %p164 = por %p162, %p163
      %p165 = scmp.le.s32.totalorder 1, %s20
      %p166 = scmp.lt.s32.totalorder %s20, 3
      %p167 = pnand %p165, %p166
      %p168 = pneg %p167
      // Predicated region
      $region9: #{tpu_custom_call.1} parent=5 // pred_check
        _
      $region10: #{tpu_custom_call.1} parent=5 // pred_check_branch
        %170 = sbr.rel (%p167) target = $region12
      $region11: #{tpu_custom_call.1} parent=5 // pred_region
        %s171 = ssub.s32 %s20, 1
        // Predicated region
        $region13: #{tpu_custom_call.1} parent=11 // pred_check
          %p172 = pneg %p53
        $region14: #{tpu_custom_call.1} parent=11 // pred_check_branch
          %174 = sbr.rel (%p172) target = $region16
        $region15: #{tpu_custom_call.1} parent=11 // pred_region
          %s176 = ssub.s32 1024, 1024
          %177 = vsyncadd [#allocation7], %s176
          %s178 = sshll.u32 [#allocation6], 4
          %s179 = int_to_ptr.vmem [resolvable:$true] %s178
          %184 = dma.hbm_to_vmem [thread:$0]  %s1, 1024, %s179, [#allocation7], 128, 128, 8
        $region16: #{tpu_custom_call.1} parent=11 // pred_fallthru
          _
      $region12: #{tpu_custom_call.1} parent=5 // pred_fallthru
        _
      %p185 = scmp.lt.s32.totalorder %s20, 2
      // Predicated region
      $region17: #{tpu_custom_call.1} parent=5 // pred_check
        %p186 = pneg %p185
      $region18: #{tpu_custom_call.1} parent=5 // pred_check_branch
        %188 = sbr.rel (%p186) target = $region20
      $region19: #{tpu_custom_call.1} parent=5 // pred_region
        // Predicated region
        $region21: #{tpu_custom_call.1} parent=19 // pred_check
          %p189 = pneg %p73
        $region22: #{tpu_custom_call.1} parent=19 // pred_check_branch
          %191 = sbr.rel (%p189) target = $region24
        $region23: #{tpu_custom_call.1} parent=19 // pred_region
          %s192 = sand.u32 %s20, 1
          %s193 = scalar_lea.sflag [#allocation10], %s192
          %s194 = sand.u32 %s63, 1
          %s195 = smul.addr %s194, 64
          %s196 = scalar_lea.vmem [#allocation9], %s195
          %s198 = ssub.s32 1024, 1024
          %199 = vsyncadd %s193, %s198
          %s200 = smul.addr %s27, 16
          %s201 = smul.addr %s200, 64
          %s202 = scalar_lea.hbm %s2, %s201
          %s203 = sshll.u32 %s196, 4
          %s204 = int_to_ptr.vmem [resolvable:$true] %s203
          %209 = dma.hbm_to_vmem [thread:$0]  %s202, 1024, %s204, %s193, 64, 64, 4
        $region24: #{tpu_custom_call.1} parent=19 // pred_fallthru
          _
        // Predicated region
        $region25: #{tpu_custom_call.1} parent=19 // pred_check
          %p210 = pneg %p99
        $region26: #{tpu_custom_call.1} parent=19 // pred_check_branch
          %212 = sbr.rel (%p210) target = $region28
        $region27: #{tpu_custom_call.1} parent=19 // pred_region
          %s213 = sand.u32 %s20, 1
          %s214 = scalar_lea.sflag [#allocation10], %s213
          %s215 = sand.u32 %s89, 1
          %s216 = smul.addr %s215, 64
          %s217 = scalar_lea.vmem [#allocation11], %s216
          %s219 = ssub.s32 1024, 1024
          %220 = vsyncadd %s214, %s219
          %s221 = smul.addr %s27, 16
          %s222 = smul.addr %s221, 64
          %s223 = scalar_lea.hbm %s3, %s222
          %s224 = sshll.u32 %s217, 4
          %s225 = int_to_ptr.vmem [resolvable:$true] %s224
          %230 = dma.hbm_to_vmem [thread:$0]  %s223, 1024, %s225, %s214, 64, 64, 4
        $region28: #{tpu_custom_call.1} parent=19 // pred_fallthru
          _
        // Predicated region
        $region29: #{tpu_custom_call.1} parent=19 // pred_check
          %p231 = pneg %p125
        $region30: #{tpu_custom_call.1} parent=19 // pred_check_branch
          %233 = sbr.rel (%p231) target = $region32
        $region31: #{tpu_custom_call.1} parent=19 // pred_region
          %p234 = scmp.lt.s32.totalorder %s27, 1
          %s235 = scalar_select %p234, %s27, 1
          %s236 = scalar_lea.vmem %s4, %s235
        $region32: #{tpu_custom_call.1} parent=19 // pred_fallthru
          _
      $region20: #{tpu_custom_call.1} parent=5 // pred_fallthru
        _
      %p237 = scmp.le.s32.totalorder 1, %s20
      %p238 = scmp.lt.s32.totalorder %s20, 3
      %p239 = pnand %p237, %p238
      %p240 = pneg %p239
      // Predicated region
      $region33: #{tpu_custom_call.1} parent=5 // pred_check
        _
      $region34: #{tpu_custom_call.1} parent=5 // pred_check_branch
        %242 = sbr.rel (%p239) target = $region36
      $region35: #{tpu_custom_call.1} parent=5 // pred_region
        %s243 = ssub.s32 %s20, 1
        // Predicated region
        $region37: #{tpu_custom_call.1} parent=35 // pred_check
          %p244 = pneg %p53
        $region38: #{tpu_custom_call.1} parent=35 // pred_check_branch
          %246 = sbr.rel (%p244) target = $region40
        $region39: #{tpu_custom_call.1} parent=35 // pred_region
          %247 = dma.done [#allocation7], 1024
        $region40: #{tpu_custom_call.1} parent=35 // pred_fallthru
          _
        %s248 = sand.u32 %s25, 1
        %s249 = scalar_lea.sflag [#allocation10], %s248
        %s250 = sand.u32 %s66, 1
        %s251 = smul.addr %s250, 64
        %s252 = scalar_lea.vmem [#allocation9], %s251
        // Predicated region
        $region41: #{tpu_custom_call.1} parent=35 // pred_check
          %p253 = pneg %p79
        $region42: #{tpu_custom_call.1} parent=35 // pred_check_branch
          %255 = sbr.rel (%p253) target = $region44
        $region43: #{tpu_custom_call.1} parent=35 // pred_region
          %256 = dma.done %s249, 1024
        $region44: #{tpu_custom_call.1} parent=35 // pred_fallthru
          _
        %s257 = sand.u32 %s25, 1
        %s258 = scalar_lea.sflag [#allocation10], %s257
        %s259 = sand.u32 %s92, 1
        %s260 = smul.addr %s259, 64
        %s261 = scalar_lea.vmem [#allocation11], %s260
        // Predicated region
        $region45: #{tpu_custom_call.1} parent=35 // pred_check
          %p262 = pneg %p105
        $region46: #{tpu_custom_call.1} parent=35 // pred_check_branch
          %264 = sbr.rel (%p262) target = $region48
        $region47: #{tpu_custom_call.1} parent=35 // pred_region
          %265 = dma.done %s258, 1024
        $region48: #{tpu_custom_call.1} parent=35 // pred_fallthru
          _
        %p266 = pneg %p53
        %p267 = pneg %p50
        %s268 = sand.u32 %s25, 1
        %s269 = scalar_lea.sflag [#allocation10], %s268
        %s270 = sand.u32 %s66, 1
        %s271 = smul.addr %s270, 64
        %s272 = scalar_lea.vmem [#allocation9], %s271
        %p273 = pneg %p79
        %p274 = pneg %p76
        %s275 = sand.u32 %s25, 1
        %s276 = scalar_lea.sflag [#allocation10], %s275
        %s277 = sand.u32 %s92, 1
        %s278 = smul.addr %s277, 64
        %s279 = scalar_lea.vmem [#allocation11], %s278
        %p280 = pneg %p105
        %p281 = pneg %p102
        %p282 = scmp.lt.s32.totalorder %s29, 1
        %s283 = scalar_select %p282, %s29, 1
        %s284 = scalar_lea.vmem %s4, %s283
        %p285 = pneg %p131
        %p286 = pneg %p128
        %p287 = pneg %p157
        %p288 = pneg %p154
        %p289 = scmp.lt.s32.totalorder %s29, 1
        %s290 = scalar_select %p289, %s29, 1
        %s291 = scalar_lea.vmem %s4, %s290
        %s292 = smul.u32 8, %s30
        %p294 = scmp.eq.s32.totalorder %s29, 0
        %p295 = scmp.eq.s32.totalorder %s30, 0
        %p296 = pnand %p294, %p295
        %p297 = pneg %p296
        // Predicated region
        $region49: #{tpu_custom_call.1} parent=35 // pred_check
          _
        $region50: #{tpu_custom_call.1} parent=35 // pred_check_branch
          %299 = sbr.rel (%p296) target = $region52
        $region51: #{tpu_custom_call.1} parent=35 // pred_region
          %v300 = vld [vmem:[#allocation6] sm:$0xff]
          %v301 = vld [vmem:[#allocation6 + $0x8] sm:$0xff]
          %v302 = vld [vmem:[#allocation6 + $0x10] sm:$0xff]
          %v303 = vld [vmem:[#allocation6 + $0x18] sm:$0xff]
          %v304 = vld [vmem:[#allocation6 + $0x20] sm:$0xff]
          %v305 = vld [vmem:[#allocation6 + $0x28] sm:$0xff]
          %v306 = vld [vmem:[#allocation6 + $0x30] sm:$0xff]
          %v307 = vld [vmem:[#allocation6 + $0x38] sm:$0xff]
          %308 = vst [vmem:[#allocation2] sm:$0xff] %v300
          %309 = vst [vmem:[#allocation2 + $0x8] sm:$0xff] %v301
          %310 = vst [vmem:[#allocation2 + $0x10] sm:$0xff] %v302
          %311 = vst [vmem:[#allocation2 + $0x18] sm:$0xff] %v303
          %312 = vst [vmem:[#allocation2 + $0x20] sm:$0xff] %v304
          %313 = vst [vmem:[#allocation2 + $0x28] sm:$0xff] %v305
          %314 = vst [vmem:[#allocation2 + $0x30] sm:$0xff] %v306
          %315 = vst [vmem:[#allocation2 + $0x38] sm:$0xff] %v307
        $region52: #{tpu_custom_call.1} parent=35 // pred_fallthru
          _
        %p316 = scmp.lt.s32.totalorder %s29, 0
        %s317 = ssub.s32 0, %s29
        %s318 = scalar_select %p316, %s317, %s29
        %s319 = sand.u32 %s318, 1
        %s320 = ssub.s32 0, %s319
        %s321 = scalar_select %p316, %s320, %s319
        %p322 = scmp.ne.s32.totalorder %s321, 0
        %p323 = scmp.lt.s32.totalorder %s321, 0
        %p324 = pnand %p323, %p322
        %p325 = pneg %p324
        %s326 = sadd.s32 %s321, 2
        %s327 = scalar_select %p325, %s326, %s321
        %s328 = smul.u32 %s327, 64
        %s329 = ssub.s32 1, %s327
        %s330 = smul.u32 %s329, 64
        %s331 = smul.u32 %s30, 64
        %s332 = smul.u32 %s29, 256
        %s333 = smul.u32 %s30, 256
        %s334 = sadd.s32 %s332, %s333
        loop: start=0, step=1, limit=64
        $region53: #{tpu_custom_call.1} parent=35 // loop_pre_header
          _
        $region54: #{tpu_custom_call.1} parent=35 // loop_header
          %s336 = sphi 0, %s340
          %p337 = scmp.ge.s32.totalorder %s336, 64
        $region55: #{tpu_custom_call.1} parent=35 // loop_header_branch
          %339 = sbr.rel (%p337) target = $region59
        $region56: #{tpu_custom_call.1} parent=35 // loop_body
          %s341 = smul.u32 %s336, 4
          %s342 = sadd.s32 %s334, %s341
          %s343 = sld [smem:[#allocation5 + %s342]]
          %s344 = sadd.s32 %s328, %s343
          %s345 = scalar_lea.vmem [#allocation2], %s344
          %v346 = vld [vmem:[%s345] sm:$0x1]
          %s347 = sadd.s32 %s342, 1
          %s348 = sld [smem:[#allocation5 + %s347]]
          %s349 = sadd.s32 %s328, %s348
          %s350 = scalar_lea.vmem [#allocation2], %s349
          %v351 = vld [vmem:[%s350] sm:$0x1]
          %v352 = vmax.f32 %v346, %v351
          %s353 = sadd.s32 %s342, 2
          %s354 = sld [smem:[#allocation5 + %s353]]
          %s355 = sadd.s32 %s328, %s354
          %s356 = scalar_lea.vmem [#allocation2], %s355
          %v357 = vld [vmem:[%s356] sm:$0x1]
          %v358 = vmax.f32 %v352, %v357
          %s359 = sadd.s32 %s342, 3
          %s360 = sld [smem:[#allocation5 + %s359]]
          %s361 = sadd.s32 %s328, %s360
          %s362 = scalar_lea.vmem [#allocation2], %s361
          %v363 = vld [vmem:[%s362] sm:$0x1]
          %v364 = vmax.f32 %v358, %v363
          %s365 = scalar_lea.vmem [#allocation3], %s336
          %366 = vst [vmem:[%s365] sm:$0x1] %v364
        $region57: #{tpu_custom_call.1} parent=35 // loop_footer
          %s340 = sadd.s32 1, %s336
        $region58: #{tpu_custom_call.1} parent=35 // loop_footer_branch
          %335 = sbr.rel target = $region54
        $region59: #{tpu_custom_call.1} parent=35 // loop_exit
          _
        %s367 = sadd.s32 %s328, %s331
        %s368 = scalar_lea.vmem [#allocation2], %s367
        %v369 = vld [vmem:[%s368] sm:$0xff]
        %v370 = vld [vmem:[%s368 + $0x8] sm:$0xff]
        %v371 = vld [vmem:[%s368 + $0x10] sm:$0xff]
        %v372 = vld [vmem:[%s368 + $0x18] sm:$0xff]
        %v373 = vld [vmem:[%s368 + $0x20] sm:$0xff]
        %v374 = vld [vmem:[%s368 + $0x28] sm:$0xff]
        %v375 = vld [vmem:[%s368 + $0x30] sm:$0xff]
        %v376 = vld [vmem:[%s368 + $0x38] sm:$0xff]
        %v377 = vld [vmem:[#allocation3] sm:$0xff]
        %v378 = vld [vmem:[#allocation3 + $0x8] sm:$0xff]
        %v379 = vld [vmem:[#allocation3 + $0x10] sm:$0xff]
        %v380 = vld [vmem:[#allocation3 + $0x18] sm:$0xff]
        %v381 = vld [vmem:[#allocation3 + $0x20] sm:$0xff]
        %v382 = vld [vmem:[#allocation3 + $0x28] sm:$0xff]
        %v383 = vld [vmem:[#allocation3 + $0x30] sm:$0xff]
        %v384 = vld [vmem:[#allocation3 + $0x38] sm:$0xff]
        %v385 = vpack.c.bf16 %v370, %v369
        %v386 = vpack.c.bf16 %v372, %v371
        %v387 = vpack.c.bf16 %v374, %v373
        %v388 = vpack.c.bf16 %v376, %v375
        %v389 = vld [vmem:[%s252] sm:$0xf]
        %v390 = vld [vmem:[%s252 + $0x4] sm:$0xf]
        %v391 = vld [vmem:[%s252 + $0x8] sm:$0xf]
        %v392 = vld [vmem:[%s252 + $0xc] sm:$0xf]
        %v393 = vld [vmem:[%s252 + $0x10] sm:$0xf]
        %v394 = vld [vmem:[%s252 + $0x14] sm:$0xf]
        %v395 = vld [vmem:[%s252 + $0x18] sm:$0xf]
        %v396 = vld [vmem:[%s252 + $0x1c] sm:$0xf]
        %v397 = vld [vmem:[%s252 + $0x20] sm:$0xf]
        %v398 = vld [vmem:[%s252 + $0x24] sm:$0xf]
        %v399 = vld [vmem:[%s252 + $0x28] sm:$0xf]
        %v400 = vld [vmem:[%s252 + $0x2c] sm:$0xf]
        %v401 = vld [vmem:[%s252 + $0x30] sm:$0xf]
        %v402 = vld [vmem:[%s252 + $0x34] sm:$0xf]
        %v403 = vld [vmem:[%s252 + $0x38] sm:$0xf]
        %v404 = vld [vmem:[%s252 + $0x3c] sm:$0xf]
        %v405 = vpack.c.bf16 %v378, %v377
        %v406 = vpack.c.bf16 %v380, %v379
        %v407 = vpack.c.bf16 %v382, %v381
        %v408 = vpack.c.bf16 %v384, %v383
        %v409 = vld [vmem:[%s261] sm:$0xf]
        %v410 = vld [vmem:[%s261 + $0x4] sm:$0xf]
        %v411 = vld [vmem:[%s261 + $0x8] sm:$0xf]
        %v412 = vld [vmem:[%s261 + $0xc] sm:$0xf]
        %v413 = vld [vmem:[%s261 + $0x10] sm:$0xf]
        %v414 = vld [vmem:[%s261 + $0x14] sm:$0xf]
        %v415 = vld [vmem:[%s261 + $0x18] sm:$0xf]
        %v416 = vld [vmem:[%s261 + $0x1c] sm:$0xf]
        %v417 = vld [vmem:[%s261 + $0x20] sm:$0xf]
        %v418 = vld [vmem:[%s261 + $0x24] sm:$0xf]
        %v419 = vld [vmem:[%s261 + $0x28] sm:$0xf]
        %v420 = vld [vmem:[%s261 + $0x2c] sm:$0xf]
        %v421 = vld [vmem:[%s261 + $0x30] sm:$0xf]
        %v422 = vld [vmem:[%s261 + $0x34] sm:$0xf]
        %v423 = vld [vmem:[%s261 + $0x38] sm:$0xf]
        %v424 = vld [vmem:[%s261 + $0x3c] sm:$0xf]
        %v441 = vunpack.c.l.b16 %v409
        %v442 = vunpack.c.l.b16 %v410
        %v443 = vunpack.c.l.b16 %v411
        %v444 = vunpack.c.l.b16 %v412
        %v445 = vunpack.c.l.b16 %v413
        %v446 = vunpack.c.l.b16 %v414
        %v447 = vunpack.c.l.b16 %v415
        %v448 = vunpack.c.l.b16 %v416
        %v449 = vunpack.c.l.b16 %v417
        %v450 = vunpack.c.l.b16 %v418
        %v451 = vunpack.c.l.b16 %v419
        %v452 = vunpack.c.l.b16 %v420
        %v453 = vunpack.c.l.b16 %v421
        %v454 = vunpack.c.l.b16 %v422
        %v455 = vunpack.c.l.b16 %v423
        %v456 = vunpack.c.l.b16 %v424
        %v457 = vpack.c.b16 %v442, %v441
        %v458 = vpack.c.b16 %v444, %v443
        %v459 = vpack.c.b16 %v446, %v445
        %v460 = vpack.c.b16 %v448, %v447
        %v461 = vpack.c.b16 %v450, %v449
        %v462 = vpack.c.b16 %v452, %v451
        %v463 = vpack.c.b16 %v454, %v453
        %v464 = vpack.c.b16 %v456, %v455
        %473 = vmatprep.subr.bf16.mxu0 0
        %474 = vmatpush1.bf16.msra.mxu0 %v457
        %475 = vmatprep.subr.bf16.mxu0 0
        %476 = vmatpush1.bf16.msra.mxu0 %v458
        %477 = vmatprep.subr.bf16.mxu0 0
        %478 = vmatpush1.bf16.msra.mxu0 %v459
        %479 = vmatprep.subr.bf16.mxu0 0
        %480 = vmatpush1.bf16.msra.mxu0 %v460
        %481 = vmatprep.subr.bf16.mxu0 0
        %482 = vmatpush1.bf16.msra.mxu0 %v461
        %483 = vmatprep.subr.bf16.mxu0 0
        %484 = vmatpush1.bf16.msra.mxu0 %v462
        %485 = vmatprep.subr.bf16.mxu0 0
        %486 = vmatpush1.bf16.msra.mxu0 %v463
        %487 = vmatprep.subr.bf16.mxu0 0
        %488 = vmatpush1.bf16.msra.mxu0 %v464
        %489 = vmatprep.subr.bf16.mxu0 0
        %490 = vmatpush1.bf16.msra.mxu0 0
        %491 = vmatprep.subr.bf16.mxu0 0
        %492 = vmatpush1.bf16.msra.mxu0 0
        %493 = vmatprep.subr.bf16.mxu0 0
        %494 = vmatpush1.bf16.msra.mxu0 0
        %495 = vmatprep.subr.bf16.mxu0 0
        %496 = vmatpush1.bf16.msra.mxu0 0
        %497 = vmatprep.subr.bf16.mxu0 0
        %498 = vmatpush1.bf16.msra.mxu0 0
        %499 = vmatprep.subr.bf16.mxu0 0
        %500 = vmatpush1.bf16.msra.mxu0 0
        %501 = vmatprep.subr.bf16.mxu0 0
        %502 = vmatpush1.bf16.msra.mxu0 0
        %503 = vmatprep.subr.bf16.mxu0 0
        %504 = vmatpush1.bf16.msra.mxu0 0
        %505 = vmatprep.mubr.bf16.mxu0 0
        %506 = vmatmul.mubr.bf16.gmra.mrb[0].mxu0 %v405
        %v507 = vpop.f32.mrb[0].mxu0
        %v508 = vadd.f32 0.0, %v507
        %v509 = vpop.f32.mrb[0].mxu0
        %v510 = vpop.f32.mrb[0].mxu0
        %v511 = vadd.f32 0.0, %v510
        %v512 = vpop.f32.mrb[0].mxu0
        %513 = vmatprep.mubr.bf16.mxu0 0
        %514 = vmatmul.mubr.bf16.gmra.mrb[0].mxu0 %v406
        %v515 = vpop.f32.mrb[0].mxu0
        %v516 = vadd.f32 0.0, %v515
        %v517 = vpop.f32.mrb[0].mxu0
        %v518 = vpop.f32.mrb[0].mxu0
        %v519 = vadd.f32 0.0, %v518
        %v520 = vpop.f32.mrb[0].mxu0
        %521 = vmatprep.mubr.bf16.mxu0 0
        %522 = vmatmul.mubr.bf16.gmra.mrb[0].mxu0 %v407
        %v523 = vpop.f32.mrb[0].mxu0
        %v524 = vadd.f32 0.0, %v523
        %v525 = vpop.f32.mrb[0].mxu0
        %v526 = vpop.f32.mrb[0].mxu0
        %v527 = vadd.f32 0.0, %v526
        %v528 = vpop.f32.mrb[0].mxu0
        %529 = vmatprep.mubr.bf16.mxu0 0
        %530 = vmatmul.mubr.bf16.gmra.mrb[0].mxu0 %v408
        %v531 = vpop.f32.mrb[0].mxu0
        %v532 = vadd.f32 0.0, %v531
        %v533 = vpop.f32.mrb[0].mxu0
        %v534 = vpop.f32.mrb[0].mxu0
        %v535 = vadd.f32 0.0, %v534
        %v536 = vpop.f32.mrb[0].mxu0
        %537 = vdwg.mxu0
        %v554 = vunpack.c.l.b16 %v389
        %v555 = vunpack.c.l.b16 %v390
        %v556 = vunpack.c.l.b16 %v391
        %v557 = vunpack.c.l.b16 %v392
        %v558 = vunpack.c.l.b16 %v393
        %v559 = vunpack.c.l.b16 %v394
        %v560 = vunpack.c.l.b16 %v395
        %v561 = vunpack.c.l.b16 %v396
        %v562 = vunpack.c.l.b16 %v397
        %v563 = vunpack.c.l.b16 %v398
        %v564 = vunpack.c.l.b16 %v399
        %v565 = vunpack.c.l.b16 %v400
        %v566 = vunpack.c.l.b16 %v401
        %v567 = vunpack.c.l.b16 %v402
        %v568 = vunpack.c.l.b16 %v403
        %v569 = vunpack.c.l.b16 %v404
        %v570 = vpack.c.b16 %v555, %v554
        %v571 = vpack.c.b16 %v557, %v556
        %v572 = vpack.c.b16 %v559, %v558
        %v573 = vpack.c.b16 %v561, %v560
        %v574 = vpack.c.b16 %v563, %v562
        %v575 = vpack.c.b16 %v565, %v564
        %v576 = vpack.c.b16 %v567, %v566
        %v577 = vpack.c.b16 %v569, %v568
        %586 = vmatprep.subr.bf16.mxu0 0
        %587 = vmatpush1.bf16.msra.mxu0 %v570
        %588 = vmatprep.subr.bf16.mxu0 0
        %589 = vmatpush1.bf16.msra.mxu0 %v571
        %590 = vmatprep.subr.bf16.mxu0 0
        %591 = vmatpush1.bf16.msra.mxu0 %v572
        %592 = vmatprep.subr.bf16.mxu0 0
        %593 = vmatpush1.bf16.msra.mxu0 %v573
        %594 = vmatprep.subr.bf16.mxu0 0
        %595 = vmatpush1.bf16.msra.mxu0 %v574
        %596 = vmatprep.subr.bf16.mxu0 0
        %597 = vmatpush1.bf16.msra.mxu0 %v575
        %598 = vmatprep.subr.bf16.mxu0 0
        %599 = vmatpush1.bf16.msra.mxu0 %v576
        %600 = vmatprep.subr.bf16.mxu0 0
        %601 = vmatpush1.bf16.msra.mxu0 %v577
        %602 = vmatprep.subr.bf16.mxu0 0
        %603 = vmatpush1.bf16.msra.mxu0 0
        %604 = vmatprep.subr.bf16.mxu0 0
        %605 = vmatpush1.bf16.msra.mxu0 0
        %606 = vmatprep.subr.bf16.mxu0 0
        %607 = vmatpush1.bf16.msra.mxu0 0
        %608 = vmatprep.subr.bf16.mxu0 0
        %609 = vmatpush1.bf16.msra.mxu0 0
        %610 = vmatprep.subr.bf16.mxu0 0
        %611 = vmatpush1.bf16.msra.mxu0 0
        %612 = vmatprep.subr.bf16.mxu0 0
        %613 = vmatpush1.bf16.msra.mxu0 0
        %614 = vmatprep.subr.bf16.mxu0 0
        %615 = vmatpush1.bf16.msra.mxu0 0
        %616 = vmatprep.subr.bf16.mxu0 0
        %617 = vmatpush1.bf16.msra.mxu0 0
        %618 = vmatprep.mubr.bf16.mxu0 0
        %619 = vmatmul.mubr.bf16.gmra.mrb[0].mxu0 %v385
        %v620 = vpop.f32.mrb[0].mxu0
        %v621 = vadd.f32 %v508, %v620
        %v622 = vpop.f32.mrb[0].mxu0
        %v623 = vpop.f32.mrb[0].mxu0
        %v624 = vadd.f32 %v511, %v623
        %v625 = vpop.f32.mrb[0].mxu0
        %626 = vmatprep.mubr.bf16.mxu0 0
        %627 = vmatmul.mubr.bf16.gmra.mrb[0].mxu0 %v386
        %v628 = vpop.f32.mrb[0].mxu0
        %v629 = vadd.f32 %v516, %v628
        %v630 = vpop.f32.mrb[0].mxu0
        %v631 = vpop.f32.mrb[0].mxu0
        %v632 = vadd.f32 %v519, %v631
        %v633 = vpop.f32.mrb[0].mxu0
        %634 = vmatprep.mubr.bf16.mxu0 0
        %635 = vmatmul.mubr.bf16.gmra.mrb[0].mxu0 %v387
        %v636 = vpop.f32.mrb[0].mxu0
        %v637 = vadd.f32 %v524, %v636
        %v638 = vpop.f32.mrb[0].mxu0
        %v639 = vpop.f32.mrb[0].mxu0
        %v640 = vadd.f32 %v527, %v639
        %v641 = vpop.f32.mrb[0].mxu0
        %642 = vmatprep.mubr.bf16.mxu0 0
        %643 = vmatmul.mubr.bf16.gmra.mrb[0].mxu0 %v388
        %v644 = vpop.f32.mrb[0].mxu0
        %v645 = vadd.f32 %v532, %v644
        %v646 = vpop.f32.mrb[0].mxu0
        %v647 = vpop.f32.mrb[0].mxu0
        %v648 = vadd.f32 %v535, %v647
        %v649 = vpop.f32.mrb[0].mxu0
        %650 = vdwg.mxu0
        %v651 = vld [vmem:[%s291] sm:$0x1]
        %v653 = vlaneseq
        %v654 = vshrl.u32 %v653, 7
        %v655 = vsub.s32 0, %v654
        %v656 = vrot.slane %v651, %v655
        %v658 = vadd.f32 %v621, %v656
        %v659 = vadd.f32 %v624, %v656
        %v660 = vadd.f32 %v629, %v656
        %v661 = vadd.f32 %v632, %v656
        %v662 = vadd.f32 %v637, %v656
        %v663 = vadd.f32 %v640, %v656
        %v664 = vadd.f32 %v645, %v656
        %v665 = vadd.f32 %v648, %v656
        %v666 = vxor.u32 %v658, 2147483648
        %v667 = vxor.u32 %v659, 2147483648
        %v668 = vxor.u32 %v660, 2147483648
        %v669 = vxor.u32 %v661, 2147483648
        %v670 = vxor.u32 %v662, 2147483648
        %v671 = vxor.u32 %v663, 2147483648
        %v672 = vxor.u32 %v664, 2147483648
        %v673 = vxor.u32 %v665, 2147483648
        %v674 = vmul.f32 %v666, 1.442695
        %v675 = vpow.pop %v674
        %v676 = vmul.f32 %v667, 1.442695
        %v677 = vpow.pop %v676
        %v678 = vmul.f32 %v668, 1.442695
        %v679 = vpow.pop %v678
        %v680 = vmul.f32 %v669, 1.442695
        %v681 = vpow.pop %v680
        %v682 = vmul.f32 %v670, 1.442695
        %v683 = vpow.pop %v682
        %v684 = vmul.f32 %v671, 1.442695
        %v685 = vpow.pop %v684
        %v686 = vmul.f32 %v672, 1.442695
        %v687 = vpow.pop %v686
        %v688 = vmul.f32 %v673, 1.442695
        %v689 = vpow.pop %v688
        %v690 = vadd.f32 %v675, 1.0
        %v691 = vadd.f32 %v677, 1.0
        %v692 = vadd.f32 %v679, 1.0
        %v693 = vadd.f32 %v681, 1.0
        %v694 = vadd.f32 %v683, 1.0
        %v695 = vadd.f32 %v685, 1.0
        %v696 = vadd.f32 %v687, 1.0
        %v697 = vadd.f32 %v689, 1.0
        %v698 = vrcp.pop %v690
        %v699 = vmul.f32 1.0, %v698
        %v700 = vrcp.pop %v691
        %v701 = vmul.f32 1.0, %v700
        %v702 = vrcp.pop %v692
        %v703 = vmul.f32 1.0, %v702
        %v704 = vrcp.pop %v693
        %v705 = vmul.f32 1.0, %v704
        %v706 = vrcp.pop %v694
        %v707 = vmul.f32 1.0, %v706
        %v708 = vrcp.pop %v695
        %v709 = vmul.f32 1.0, %v708
        %v710 = vrcp.pop %v696
        %v711 = vmul.f32 1.0, %v710
        %v712 = vrcp.pop %v697
        %v713 = vmul.f32 1.0, %v712
        %v714 = vmul.f32 %v699, %v699
        %v715 = vmul.f32 %v701, %v701
        %v716 = vmul.f32 %v703, %v703
        %v717 = vmul.f32 %v705, %v705
        %v718 = vmul.f32 %v707, %v707
        %v719 = vmul.f32 %v709, %v709
        %v720 = vmul.f32 %v711, %v711
        %v721 = vmul.f32 %v713, %v713
        %722 = vadd.xlane.f32.xlu0 %v714
        %v723 = vpop.xlane.xlu0 %722
        %724 = vadd.xlane.f32.xlu0 %v715
        %v725 = vpop.xlane.xlu0 %724
        %726 = vadd.xlane.f32.xlu0 %v716
        %v727 = vpop.xlane.xlu0 %726
        %728 = vadd.xlane.f32.xlu0 %v717
        %v729 = vpop.xlane.xlu0 %728
        %730 = vadd.xlane.f32.xlu0 %v718
        %v731 = vpop.xlane.xlu0 %730
        %732 = vadd.xlane.f32.xlu0 %v719
        %v733 = vpop.xlane.xlu0 %732
        %734 = vadd.xlane.f32.xlu0 %v720
        %v735 = vpop.xlane.xlu0 %734
        %736 = vadd.xlane.f32.xlu0 %v721
        %v737 = vpop.xlane.xlu0 %736
        %v738 = vadd.f32 %v723, 1e-12
        %v739 = vadd.f32 %v725, 1e-12
        %v740 = vadd.f32 %v727, 1e-12
        %v741 = vadd.f32 %v729, 1e-12
        %v742 = vadd.f32 %v731, 1e-12
        %v743 = vadd.f32 %v733, 1e-12
        %v744 = vadd.f32 %v735, 1e-12
        %v745 = vadd.f32 %v737, 1e-12
        %v746 = vrsqrt.pop %v738
        %v747 = vrsqrt.pop %v739
        %v748 = vrsqrt.pop %v740
        %v749 = vrsqrt.pop %v741
        %v750 = vrsqrt.pop %v742
        %v751 = vrsqrt.pop %v743
        %v752 = vrsqrt.pop %v744
        %v753 = vrsqrt.pop %v745
        %v754 = vmul.f32 %v699, %v746
        %v755 = vmul.f32 %v701, %v747
        %v756 = vmul.f32 %v703, %v748
        %v757 = vmul.f32 %v705, %v749
        %v758 = vmul.f32 %v707, %v750
        %v759 = vmul.f32 %v709, %v751
        %v760 = vmul.f32 %v711, %v752
        %v761 = vmul.f32 %v713, %v753
        %s762 = sadd.s32 %s330, %s331
        %s763 = scalar_lea.vmem [#allocation2], %s762
        %764 = vst [vmem:[%s763] sm:$0xff] %v754
        %765 = vst [vmem:[%s763 + $0x8] sm:$0xff] %v755
        %766 = vst [vmem:[%s763 + $0x10] sm:$0xff] %v756
        %767 = vst [vmem:[%s763 + $0x18] sm:$0xff] %v757
        %768 = vst [vmem:[%s763 + $0x20] sm:$0xff] %v758
        %769 = vst [vmem:[%s763 + $0x28] sm:$0xff] %v759
        %770 = vst [vmem:[%s763 + $0x30] sm:$0xff] %v760
        %771 = vst [vmem:[%s763 + $0x38] sm:$0xff] %v761
        %772 = vst [vmem:[#allocation12] sm:$0xff] %v754
        %773 = vst [vmem:[#allocation12 + $0x8] sm:$0xff] %v755
        %774 = vst [vmem:[#allocation12 + $0x10] sm:$0xff] %v756
        %775 = vst [vmem:[#allocation12 + $0x18] sm:$0xff] %v757
        %776 = vst [vmem:[#allocation12 + $0x20] sm:$0xff] %v758
        %777 = vst [vmem:[#allocation12 + $0x28] sm:$0xff] %v759
        %778 = vst [vmem:[#allocation12 + $0x30] sm:$0xff] %v760
        %779 = vst [vmem:[#allocation12 + $0x38] sm:$0xff] %v761
        // Predicated region
        $region60: #{tpu_custom_call.1} parent=35 // pred_check
          %p780 = pneg %p154
        $region61: #{tpu_custom_call.1} parent=35 // pred_check_branch
          %782 = sbr.rel (%p780) target = $region63
        $region62: #{tpu_custom_call.1} parent=35 // pred_region
          %s783 = smul.u32 8, %s30
          %s785 = ssub.s32 1024, 1024
          %786 = vsyncadd [#allocation8], %s785
          %s787 = smul.addr %s783, 128
          %s788 = scalar_lea.hbm %s5, %s787
          %s789 = sshll.u32 [#allocation12], 4
          %s790 = int_to_ptr.vmem [resolvable:$true] %s789
          %795 = dma.vmem_to_hbm [thread:$0]  %s790, 1024, %s788, [#allocation8], 128, 128, 8
        $region63: #{tpu_custom_call.1} parent=35 // pred_fallthru
          _
        // Predicated region
        $region64: #{tpu_custom_call.1} parent=35 // pred_check
          %p796 = pneg %p154
        $region65: #{tpu_custom_call.1} parent=35 // pred_check_branch
          %798 = sbr.rel (%p796) target = $region67
        $region66: #{tpu_custom_call.1} parent=35 // pred_region
          %799 = dma.done [#allocation8], 1024
        $region67: #{tpu_custom_call.1} parent=35 // pred_fallthru
          _
      $region36: #{tpu_custom_call.1} parent=5 // pred_fallthru
        _
      %p800 = scmp.le.s32.totalorder 2, %s20
      // Predicated region
      $region68: #{tpu_custom_call.1} parent=5 // pred_check
        %p801 = pneg %p800
      $region69: #{tpu_custom_call.1} parent=5 // pred_check_branch
        %803 = sbr.rel (%p801) target = $region71
      $region70: #{tpu_custom_call.1} parent=5 // pred_region
        %s804 = ssub.s32 %s20, 2
      $region71: #{tpu_custom_call.1} parent=5 // pred_fallthru
        _
    $region6: #{tpu_custom_call.1} parent=1 // loop_footer
      %s24 = sadd.s32 1, %s20
    $region7: #{tpu_custom_call.1} parent=1 // loop_footer_branch
      %19 = sbr.rel target = $region3
    $region8: #{tpu_custom_call.1} parent=1 // loop_exit
      _
    %805 = vsyncpa [#allocation7], 1
    %s806 = scalar_lea.sflag [#allocation7], 1
    %807 = vsyncpa %s806, 1
    %808 = vsyncpa [#allocation10], 1
    %s809 = scalar_lea.sflag [#allocation10], 1
    %810 = vsyncpa %s809, 1
    %811 = vsyncpa [#allocation8], 1
    %s812 = scalar_lea.sflag [#allocation8], 1
    %813 = vsyncpa %s812, 1

</llo_original>
